<compile_context>
chip_gen: v6e
topology: v6e:2x2x1
jax: 0.10.0
libtpu: 0.0.40
codegen_flags: <defaults>
</compile_context>

<pallas_src>
import functools

import jax
import jax.numpy as jnp
from jax.experimental import pallas as pl
from jax.experimental.pallas import tpu as pltpu


# ---------------------------------------------------------------------------
# Kernel: one (batch n, support s) grid step.
#   z0_ref : (V, Fp)          f32   identity piece + bias   (constant over s)
#   zh_ref : (order, V, Fp)   bf16  channel-pre-mixed hop pieces, support s
#   a_ref  : (V, V)           bf16  adjacency for support s
#   o_ref  : (V, Fp)          f32   output accumulator      (constant over s)
# ---------------------------------------------------------------------------
def _pgcn_kernel(z0_ref, zh_ref, a_ref, o_ref, *, order):
    s = pl.program_id(1)

    @pl.when(s == 0)
    def _():
        o_ref[...] = z0_ref[...]

    a = a_ref[...]                                        # (V, V)
    # Horner:  A @ (z_1 + A @ (z_2 + ... + A @ z_order))
    t = zh_ref[order - 1]                                 # (V, Fp)
    for k in range(order - 2, -1, -1):
        h = jnp.dot(a, t, preferred_element_type=jnp.float32)
        t = (zh_ref[k] + h).astype(a.dtype)
    o_ref[...] += jnp.dot(a, t, preferred_element_type=jnp.float32)


# ---------------------------------------------------------------------------
# Full pgcn forward.  x in PyTorch NCHW layout (N, C, V, L).
# ---------------------------------------------------------------------------
def pgcn_forward(x, supports, weight, bias, *, order=2, temp=1,
                 compute_dtype=jnp.bfloat16):
    N, C, V, L = x.shape
    S = len(supports)
    c_out, c_tot = weight.shape
    P = order * S + 1
    assert c_tot == P * C
    # TODO(synk): temp == 0 (empty PyTorch slice h[..., -L:-0]) is unsupported.
    assert temp >= 1
    Lp = L - temp
    Fo = c_out * Lp
    Fp = ((Fo + 127) // 128) * 128          # lane-dense (multiple-of-128) width
    pad = Fp - Fo
    f32 = jnp.float32

    # Drop the sliced-off time columns before any compute (neither the graph
    # propagation nor the 1x1 conv mixes the time axis).
    xs = x[:, :, :, :Lp].astype(f32)

    # Channel pre-mix (commutes with graph propagation); also performs the
    # NCHW -> node-major relayout inside the same einsum:
    #   z[n, p, v, o, l] = sum_c x[n, c, v, l] * W[o, p*C + c]
    w_blocks = weight.astype(f32).reshape(c_out, P, C).transpose(1, 0, 2)  # (P,c_out,C)
    z = jnp.einsum('ncvl,poc->npvol', xs, w_blocks).reshape(N, P, V, Fo)
    if pad:
        z = jnp.pad(z, ((0, 0), (0, 0), (0, 0), (0, pad)))

    b_exp = jnp.repeat(bias.astype(f32), Lp)              # (c_out*Lp,), c_out-major
    if pad:
        b_exp = jnp.pad(b_exp, (0, pad))
    z0 = z[:, 0] + b_exp[None, None, :]                    # (N, V, Fp)        f32
    zh = z[:, 1:].astype(compute_dtype)                    # (N, S*order, V, Fp) bf16
    a_stack = jnp.stack(supports, axis=1).astype(compute_dtype)   # (N, S, V, V)

    # VMEM budget: double-buffered blocks + headroom, capped well below the
    # 64 MiB physical per-TC VMEM of v7x.
    itemsize = jnp.dtype(compute_dtype).itemsize
    block_bytes = (V * Fp * 4                    # z0
                   + order * V * Fp * itemsize   # zh
                   + V * V * itemsize            # a
                   + V * Fp * 4)                 # out
    vmem_limit = int(min(48 * 1024 * 1024,
                         max(32 * 1024 * 1024, 6 * block_bytes)))

    kernel = functools.partial(_pgcn_kernel, order=order)
    out = pl.pallas_call(
        kernel,
        out_shape=jax.ShapeDtypeStruct((N, V, Fp), f32),
        grid_spec=pltpu.PrefetchScalarGridSpec(
            num_scalar_prefetch=0,
            grid=(N, S),
            in_specs=[
                # z0: constant over s -> DMAed once per batch element
                pl.BlockSpec((None, V, Fp), lambda n, s: (n, 0, 0)),
                # hop pieces for support s (block of `order` rows)
                pl.BlockSpec((None, order, V, Fp), lambda n, s: (n, s, 0, 0)),
                # adjacency for support s
                pl.BlockSpec((None, None, V, V), lambda n, s: (n, s, 0, 0)),
            ],
            # output accumulator: constant over s, written back on n change
            out_specs=pl.BlockSpec((None, V, Fp), lambda n, s: (n, 0, 0)),
        ),
        compiler_params=pltpu.CompilerParams(
            dimension_semantics=("parallel", "arbitrary"),
            vmem_limit_bytes=vmem_limit,
        ),
    )(z0, zh, a_stack)

    # glue: slice off lane padding, back to NCHW (time already trimmed to Lp)
    y = out[:, :, :Fo].reshape(N, V, c_out, Lp)
    return jnp.transpose(y, (0, 2, 1, 3)).astype(x.dtype)   # (N, c_out, V, Lp)


# ---------------------------------------------------------------------------
# Pure-JAX reference (mirrors the PyTorch forward exactly) for verification.
# ---------------------------------------------------------------------------
def pgcn_ref(x, supports, weight, bias, *, order=2, temp=1):
    out = [x]
    for a in supports:
        x1 = jnp.einsum('ncvl,nwv->ncwl', x, a)
        out.append(x1)
        for _ in range(2, order + 1):
            x2 = jnp.einsum('ncvl,nwv->ncwl', x1, a)
            out.append(x2)
            x1 = x2
    h = jnp.concatenate(out, axis=1)
    y = jnp.einsum('ncvl,oc->novl', h, weight) + bias[None, :, None, None]
    L = y.shape[3]
    return y[:, :, :, : L - temp]


if __name__ == "__main__":
    # small, module-consistent shapes
    N, c_in, V, L = 2, 4, 16, 8
    support_len, order, temp = 3, 2, 1
    c_out = 8
    c_tot = (order * support_len + 1) * c_in

    key = jax.random.PRNGKey(0)
    kx, kw, kb, *ka = jax.random.split(key, 3 + support_len)

    x = jax.random.normal(kx, (N, c_in, V, L), dtype=jnp.float32)
    supports = []
    for s in range(support_len):
        a = jax.random.uniform(ka[s], (N, V, V), dtype=jnp.float32)
        a = a / jnp.sum(a, axis=-1, keepdims=True)        # row-normalized adjacency
        supports.append(a)

    # Conv2d(1x1) parameters: weight (c_out, c_tot, 1, 1) -> (c_out, c_tot)
    weight = jax.random.normal(kw, (c_out, c_tot), dtype=jnp.float32) * 0.1
    bias = jax.random.normal(kb, (c_out,), dtype=jnp.float32) * 0.1

    out = pgcn_forward(x, supports, weight, bias, order=order, temp=temp)
    out = jax.block_until_ready(out)

    ref = pgcn_ref(x, supports, weight, bias, order=order, temp=temp)
    assert out.shape == (N, c_out, V, L - temp), out.shape
    # bf16 MXU inputs with f32 accumulation: loose-but-meaningful tolerance.
    err = float(jnp.max(jnp.abs(out - ref)))
    assert err < 5e-2, err
    print("KERNEL_OK")
</pallas_src>

<mosaic_0001>
module attributes {stable_mosaic.version = 11 : i64} {
  func.func @_pgcn_kernel(%arg0: i32, %arg1: i32, %arg2: memref<1x16x128xf32, #tpu.memory_space<vmem>>, %arg3: memref<1x2x16x128xbf16, #tpu.memory_space<vmem>>, %arg4: memref<1x1x16x16xbf16, #tpu.memory_space<vmem>>, %arg5: memref<1x16x128xf32, #tpu.memory_space<vmem>>) attributes {dimension_semantics = [#tpu.dimension_semantics<parallel>, #tpu.dimension_semantics<arbitrary>], iteration_bounds = array<i64: 2, 3>, scalar_prefetch = 0 : i64, scratch_operands = 0 : i64, tpu.core_type = #tpu.core_type<tc>, window_params = [{transform_indices = @transform_0, window_bounds = array<i64: 1, 16, 128>}, {transform_indices = @transform_1, window_bounds = array<i64: 1, 2, 16, 128>}, {transform_indices = @transform_2, window_bounds = array<i64: 1, 1, 16, 16>}, {transform_indices = @transform_3, window_bounds = array<i64: 1, 16, 128>}]} {
    %c0_i32 = arith.constant 0 : i32
    %0 = arith.cmpi eq, %arg1, %c0_i32 : i32
    %1 = arith.extui %0 : i1 to i32
    %c0_i32_0 = arith.constant 0 : i32
    %2 = arith.cmpi ne, %1, %c0_i32_0 : i32
    scf.if %2 {
      %c0_18 = arith.constant 0 : index
      %c0_19 = arith.constant 0 : index
      %c0_20 = arith.constant 0 : index
      %20 = vector.load %arg2[%c0_18, %c0_19, %c0_20] : memref<1x16x128xf32, #tpu.memory_space<vmem>>, vector<1x16x128xf32>
      %21 = vector.shape_cast %20 : vector<1x16x128xf32> to vector<16x128xf32>
      %c0_21 = arith.constant 0 : index
      %c0_22 = arith.constant 0 : index
      %c0_23 = arith.constant 0 : index
      %22 = vector.load %arg5[%c0_21, %c0_22, %c0_23] : memref<1x16x128xf32, #tpu.memory_space<vmem>>, vector<1x16x128xf32>
      %23 = vector.shape_cast %22 : vector<1x16x128xf32> to vector<16x128xf32>
      %24 = vector.shape_cast %21 : vector<16x128xf32> to vector<1x16x128xf32>
      tpu.vector_store %arg5[%c0_21, %c0_22, %c0_23], %24 {strides = array<i32>} : memref<1x16x128xf32, #tpu.memory_space<vmem>>, vector<1x16x128xf32>,
    } else {
    }
    %c0 = arith.constant 0 : index
    %c0_1 = arith.constant 0 : index
    %c0_2 = arith.constant 0 : index
    %c0_3 = arith.constant 0 : index
    %3 = vector.load %arg4[%c0, %c0_1, %c0_2, %c0_3] : memref<1x1x16x16xbf16, #tpu.memory_space<vmem>>, vector<1x1x16x16xbf16>
    %4 = vector.shape_cast %3 : vector<1x1x16x16xbf16> to vector<16x16xbf16>
    %c0_4 = arith.constant 0 : index
    %c1 = arith.constant 1 : index
    %c0_5 = arith.constant 0 : index
    %c0_6 = arith.constant 0 : index
    %5 = vector.load %arg3[%c0_4, %c1, %c0_5, %c0_6] : memref<1x2x16x128xbf16, #tpu.memory_space<vmem>>, vector<1x1x16x128xbf16>
    %6 = vector.shape_cast %5 : vector<1x1x16x128xbf16> to vector<16x128xbf16>
    %cst = arith.constant dense<0.000000e+00> : vector<16x128xf32>
    %7 = tpu.matmul %4, %6, %cst {dimension_numbers = #tpu.dot_dimension_numbers<[1], [0], [0], [1], [0, 0, 1, 1], [], []>} : vector<16x16xbf16>, vector<16x128xbf16>, vector<16x128xf32> -> vector<16x128xf32>
    %c0_7 = arith.constant 0 : index
    %c0_8 = arith.constant 0 : index
    %c0_9 = arith.constant 0 : index
    %c0_10 = arith.constant 0 : index
    %8 = vector.load %arg3[%c0_7, %c0_8, %c0_9, %c0_10] : memref<1x2x16x128xbf16, #tpu.memory_space<vmem>>, vector<1x1x16x128xbf16>
    %9 = vector.shape_cast %8 : vector<1x1x16x128xbf16> to vector<16x128xbf16>
    %10 = arith.extf %9 : vector<16x128xbf16> to vector<16x128xf32>
    %11 = arith.addf %10, %7 : vector<16x128xf32>
    %12 = arith.truncf %11 : vector<16x128xf32> to vector<16x128xbf16>
    %c0_11 = arith.constant 0 : index
    %c0_12 = arith.constant 0 : index
    %c0_13 = arith.constant 0 : index
    %13 = vector.load %arg5[%c0_11, %c0_12, %c0_13] : memref<1x16x128xf32, #tpu.memory_space<vmem>>, vector<1x16x128xf32>
    %14 = vector.shape_cast %13 : vector<1x16x128xf32> to vector<16x128xf32>
    %cst_14 = arith.constant dense<0.000000e+00> : vector<16x128xf32>
    %15 = tpu.matmul %4, %12, %cst_14 {dimension_numbers = #tpu.dot_dimension_numbers<[1], [0], [0], [1], [0, 0, 1, 1], [], []>} : vector<16x16xbf16>, vector<16x128xbf16>, vector<16x128xf32> -> vector<16x128xf32>
    %16 = arith.addf %14, %15 : vector<16x128xf32>
    %c0_15 = arith.constant 0 : index
    %c0_16 = arith.constant 0 : index
    %c0_17 = arith.constant 0 : index
    %17 = vector.load %arg5[%c0_15, %c0_16, %c0_17] : memref<1x16x128xf32, #tpu.memory_space<vmem>>, vector<1x16x128xf32>
    %18 = vector.shape_cast %17 : vector<1x16x128xf32> to vector<16x128xf32>
    %19 = vector.shape_cast %16 : vector<16x128xf32> to vector<1x16x128xf32>
    tpu.vector_store %arg5[%c0_15, %c0_16, %c0_17], %19 {strides = array<i32>} : memref<1x16x128xf32, #tpu.memory_space<vmem>>, vector<1x16x128xf32>,
    return
  }
  func.func @transform_0(%arg0: i32, %arg1: i32) -> (i32, i32, i32) {
    %c0_i32 = arith.constant 0 : i32
    %c0_i32_0 = arith.constant 0 : i32
    %c0_i32_1 = arith.constant 0 : i32
    return %arg0, %c0_i32, %c0_i32_0 : i32, i32, i32
  }
  func.func @transform_1(%arg0: i32, %arg1: i32) -> (i32, i32, i32, i32) {
    %c0_i32 = arith.constant 0 : i32
    %c0_i32_0 = arith.constant 0 : i32
    %c0_i32_1 = arith.constant 0 : i32
    return %arg0, %arg1, %c0_i32, %c0_i32_0 : i32, i32, i32, i32
  }
  func.func @transform_2(%arg0: i32, %arg1: i32) -> (i32, i32, i32, i32) {
    %c0_i32 = arith.constant 0 : i32
    %c0_i32_0 = arith.constant 0 : i32
    %c0_i32_1 = arith.constant 0 : i32
    return %arg0, %arg1, %c0_i32, %c0_i32_0 : i32, i32, i32, i32
  }
  func.func @transform_3(%arg0: i32, %arg1: i32) -> (i32, i32, i32) {
    %c0_i32 = arith.constant 0 : i32
    %c0_i32_0 = arith.constant 0 : i32
    %c0_i32_1 = arith.constant 0 : i32
    return %arg0, %c0_i32, %c0_i32_0 : i32, i32, i32
  }
}

</mosaic_0001>

<llo_original>
// kernel: tpu_custom_call.1
$region0: #{tpu_custom_call.1}
  #allocation0 [shape = 'u32[]', space=smem, size = 0x4, offset = 0x4, fixed_abs, tag = 'smem constant byte address 0x4 - core index']
  #allocation1 [shape = 'u32[144,128]{1,0:T(1,128)}', space=vmem, size = 0x12000, scoped, tag = 'internal scratch']
  %s0 = inlined_call_operand.hbm [shape: f32[2,16,128], index: 0, kind: input, shape index: {}]
  %s1 = inlined_call_operand.hbm [shape: bf16[2,6,16,128], index: 1, kind: input, shape index: {}]
  %s2 = inlined_call_operand.hbm [shape: bf16[2,3,16,16], index: 2, kind: input, shape index: {}]
  %s3 = inlined_call_operand.hbm [shape: f32[2,16,128], index: 3, kind: output, shape index: {}]
  %s4 = sld [smem:[#allocation0]]
  $region61: #{tpu_custom_call.1} parent=0
    _
  %s6 = ssub.s32 1, %s4
  %s7 = scalar_select 0, %s6, %s4
  $region1: #{tpu_custom_call.1} parent=0
    #allocation2 [shape = 'u8[16384]{0}', space=vmem, size = 0x4000, scoped, tag = 'input window, operand 0']
    #allocation3 [shape = 's32[2]{0}', space=sflag, size = 0x8, scoped, tag = 'scoped memory for tpu_custom_call.1']
    #allocation4 [shape = 's32[2]{0}', space=sflag, size = 0x8, scoped, tag = 'scoped memory for tpu_custom_call.1']
    #allocation5 [shape = 'u8[16384]{0}', space=vmem, size = 0x4000, scoped, tag = 'input window, operand 1']
    #allocation6 [shape = 's32[2]{0}', space=sflag, size = 0x8, scoped, tag = 'scoped memory for tpu_custom_call.1']
    #allocation7 [shape = 'u8[8192]{0}', space=vmem, size = 0x2000, scoped, tag = 'input window, operand 2']
    #allocation8 [shape = 'u8[16384]{0}', space=vmem, size = 0x4000, scoped, tag = 'output window, operand 0']
    %8 = vsyncpa [#allocation3], 0
    %s9 = scalar_lea.sflag [#allocation3], 1
    %10 = vsyncpa %s9, 0
    %11 = vsyncpa [#allocation6], 0
    %s12 = scalar_lea.sflag [#allocation6], 1
    %13 = vsyncpa %s12, 0
    %14 = vsyncpa [#allocation4], 0
    %s15 = scalar_lea.sflag [#allocation4], 1
    %16 = vsyncpa %s15, 0
    loop: start=0, step=1, limit=8
    $region2: #{tpu_custom_call.1} parent=1 // loop_pre_header
      _
    $region3: #{tpu_custom_call.1} parent=1 // loop_header
      %s18 = sphi 0, %s22
      %p19 = scmp.ge.s32.totalorder %s18, 8
      %s25 = sphi 0, %s37
      %s26 = sphi 0, %s33
      %s27 = sphi 0, %s25
      %s28 = sphi 0, %s26
      %s29 = sphi 0, %s27
      %s30 = sphi 0, %s28
      %s40 = sphi 0, %s42
      %s43 = sphi 0, %s40
      %s44 = sphi 0, %s43
      %s60 = sphi 0, %s44
      %s68 = sphi 0, %s70
      %s71 = sphi 0, %s68
      %s72 = sphi 0, %s71
      %s88 = sphi 0, %s72
      %s96 = sphi 0, %s98
      %s99 = sphi 0, %s96
      %s100 = sphi 0, %s99
      %s116 = sphi 0, %s100
      %s122 = sphi 0, %s124
      %s125 = sphi 0, %s122
      %s126 = sphi 0, %s125
      %s142 = sphi 0, %s126
    $region4: #{tpu_custom_call.1} parent=1 // loop_header_branch
      %21 = sbr.rel (%p19) target = $region8
    $region5: #{tpu_custom_call.1} parent=1 // loop_body
      %s23 = ssub.s32 %s18, 1
      %s24 = ssub.s32 %s18, 2
      %s31 = sadd.s32 1, %s26
      %p32 = scmp.ge.s32.totalorder %s31, 3
      %s33 = scalar_select %p32, 0, %s31
      %s34 = sadd.s32 1, %s25
      %s35 = scalar_select %p32, %s34, %s25
      %p36 = scmp.ge.s32.totalorder %s35, 2
      %s37 = scalar_select %p36, 0, %s35
      %s38 = ssub.s32 %s25, %s37
      %p39 = scmp.eq.s32.totalorder %s38, 0
      %s41 = sadd.s32 %s40, 1
      %s42 = scalar_select %p39, %s40, %s41
      %p45 = pneg %p39
      %p46 = scmp.eq.s32.totalorder %s18, 5
      %p47 = por %p45, %p46
      %p48 = scmp.ne.s32.totalorder %s40, %s43
      %p49 = scmp.eq.s32.totalorder %s18, 0
      %p50 = por %p48, %p49
      %p51 = scmp.ne.s32.totalorder %s40, %s43
      %p52 = scmp.eq.s32.totalorder %s23, 5
      %p53 = por %p51, %p52
      %p54 = scmp.ne.s32.totalorder %s43, %s44
      %p55 = scmp.eq.s32.totalorder %s23, 0
      %p56 = por %p54, %p55
      %p57 = scmp.ne.s32.totalorder %s43, %s44
      %p58 = scmp.eq.s32.totalorder %s24, 5
      %p59 = por %p57, %p58
      %p61 = scmp.ne.s32.totalorder %s44, %s60
      %p62 = scmp.eq.s32.totalorder %s24, 0
      %p63 = por %p61, %p62
      %s64 = ssub.s32 %s25, %s37
      %s65 = ssub.s32 %s26, %s33
      %s66 = sor.u32 %s64, %s65
      %p67 = scmp.eq.s32.totalorder %s66, 0
      %s69 = sadd.s32 %s68, 1
      %s70 = scalar_select %p67, %s68, %s69
      %p73 = pneg %p67
      %p74 = scmp.eq.s32.totalorder %s18, 5
      %p75 = por %p73, %p74
      %p76 = scmp.ne.s32.totalorder %s68, %s71
      %p77 = scmp.eq.s32.totalorder %s18, 0
      %p78 = por %p76, %p77
      %p79 = scmp.ne.s32.totalorder %s68, %s71
      %p80 = scmp.eq.s32.totalorder %s23, 5
      %p81 = por %p79, %p80
      %p82 = scmp.ne.s32.totalorder %s71, %s72
      %p83 = scmp.eq.s32.totalorder %s23, 0
      %p84 = por %p82, %p83
      %p85 = scmp.ne.s32.totalorder %s71, %s72
      %p86 = scmp.eq.s32.totalorder %s24, 5
      %p87 = por %p85, %p86
      %p89 = scmp.ne.s32.totalorder %s72, %s88
      %p90 = scmp.eq.s32.totalorder %s24, 0
      %p91 = por %p89, %p90
      %s92 = ssub.s32 %s25, %s37
      %s93 = ssub.s32 %s26, %s33
      %s94 = sor.u32 %s92, %s93
      %p95 = scmp.eq.s32.totalorder %s94, 0
      %s97 = sadd.s32 %s96, 1
      %s98 = scalar_select %p95, %s96, %s97
      %p101 = pneg %p95
      %p102 = scmp.eq.s32.totalorder %s18, 5
      %p103 = por %p101, %p102
      %p104 = scmp.ne.s32.totalorder %s96, %s99
      %p105 = scmp.eq.s32.totalorder %s18, 0
      %p106 = por %p104, %p105
      %p107 = scmp.ne.s32.totalorder %s96, %s99
      %p108 = scmp.eq.s32.totalorder %s23, 5
      %p109 = por %p107, %p108
      %p110 = scmp.ne.s32.totalorder %s99, %s100
      %p111 = scmp.eq.s32.totalorder %s23, 0
      %p112 = por %p110, %p111
      %p113 = scmp.ne.s32.totalorder %s99, %s100
      %p114 = scmp.eq.s32.totalorder %s24, 5
      %p115 = por %p113, %p114
      %p117 = scmp.ne.s32.totalorder %s100, %s116
      %p118 = scmp.eq.s32.totalorder %s24, 0
      %p119 = por %p117, %p118
      %s120 = ssub.s32 %s25, %s37
      %p121 = scmp.eq.s32.totalorder %s120, 0
      %s123 = sadd.s32 %s122, 1
      %s124 = scalar_select %p121, %s122, %s123
      %p127 = pneg %p121
      %p128 = scmp.eq.s32.totalorder %s18, 5
      %p129 = por %p127, %p128
      %p130 = scmp.ne.s32.totalorder %s122, %s125
      %p131 = scmp.eq.s32.totalorder %s18, 0
      %p132 = por %p130, %p131
      %p133 = scmp.ne.s32.totalorder %s122, %s125
      %p134 = scmp.eq.s32.totalorder %s23, 5
      %p135 = por %p133, %p134
      %p136 = scmp.ne.s32.totalorder %s125, %s126
      %p137 = scmp.eq.s32.totalorder %s23, 0
      %p138 = por %p136, %p137
      %p139 = scmp.ne.s32.totalorder %s125, %s126
      %p140 = scmp.eq.s32.totalorder %s24, 5
      %p141 = por %p139, %p140
      %p143 = scmp.ne.s32.totalorder %s126, %s142
      %p144 = scmp.eq.s32.totalorder %s24, 0
      %p145 = por %p143, %p144
      %p146 = scmp.le.s32.totalorder 1, %s18
      %p147 = scmp.lt.s32.totalorder %s18, 7
      %p148 = pnand %p146, %p147
      %p149 = pneg %p148
      // Predicated region
      $region9: #{tpu_custom_call.1} parent=5 // pred_check
        _
      $region10: #{tpu_custom_call.1} parent=5 // pred_check_branch
        %151 = sbr.rel (%p148) target = $region12
      $region11: #{tpu_custom_call.1} parent=5 // pred_region
        %s152 = ssub.s32 %s18, 1
      $region12: #{tpu_custom_call.1} parent=5 // pred_fallthru
        _
      %p153 = scmp.lt.s32.totalorder %s18, 6
      // Predicated region
      $region13: #{tpu_custom_call.1} parent=5 // pred_check
        %p154 = pneg %p153
      $region14: #{tpu_custom_call.1} parent=5 // pred_check_branch
        %156 = sbr.rel (%p154) target = $region16
      $region15: #{tpu_custom_call.1} parent=5 // pred_region
        // Predicated region
        $region17: #{tpu_custom_call.1} parent=15 // pred_check
          %p157 = pneg %p50
        $region18: #{tpu_custom_call.1} parent=15 // pred_check_branch
          %159 = sbr.rel (%p157) target = $region20
        $region19: #{tpu_custom_call.1} parent=15 // pred_region
          %s160 = sand.u32 %s40, 1
          %s161 = scalar_lea.sflag [#allocation3], %s160
          %s162 = sand.u32 %s40, 1
          %s163 = smul.addr %s162, 16
          %s164 = scalar_lea.vmem [#allocation2], %s163
          %s166 = ssub.s32 256, 256
          %167 = vsyncadd %s161, %s166
          %s168 = smul.addr %s25, 2
          %s169 = smul.addr %s168, 128
          %s170 = scalar_lea.hbm %s0, %s169
          %s171 = sshll.u32 %s164, 4
          %s172 = int_to_ptr.vmem [resolvable:$true] %s171
          %177 = dma.hbm_to_vmem [thread:$0]  %s170, 256, %s172, %s161, 128, 128, 8
        $region20: #{tpu_custom_call.1} parent=15 // pred_fallthru
          _
        // Predicated region
        $region21: #{tpu_custom_call.1} parent=15 // pred_check
          %p178 = pneg %p78
        $region22: #{tpu_custom_call.1} parent=15 // pred_check_branch
          %180 = sbr.rel (%p178) target = $region24
        $region23: #{tpu_custom_call.1} parent=15 // pred_region
          %s181 = sand.u32 %s18, 1
          %s182 = scalar_lea.sflag [#allocation6], %s181
          %s183 = sand.u32 %s68, 1
          %s184 = smul.addr %s183, 16
          %s185 = scalar_lea.vmem [#allocation5], %s184
          %s186 = smul.u32 2, %s26
          %s188 = ssub.s32 256, 256
          %189 = vsyncadd %s182, %s188
          %s190 = smul.addr %s186, 2
          %s191 = smul.addr %s25, 12
          %s192 = sadd.s32 %s190, %s191
          %s193 = smul.addr %s192, 64
          %s194 = scalar_lea.hbm %s1, %s193
          %s195 = sshll.u32 %s185, 4
          %s196 = int_to_ptr.vmem [resolvable:$true] %s195
          %201 = dma.hbm_to_vmem [thread:$0]  %s194, 256, %s196, %s182, 64, 64, 4
        $region24: #{tpu_custom_call.1} parent=15 // pred_fallthru
          _
        // Predicated region
        $region25: #{tpu_custom_call.1} parent=15 // pred_check
          %p202 = pneg %p106
        $region26: #{tpu_custom_call.1} parent=15 // pred_check_branch
          %204 = sbr.rel (%p202) target = $region28
        $region27: #{tpu_custom_call.1} parent=15 // pred_region
          %s205 = sand.u32 %s18, 1
          %s206 = scalar_lea.sflag [#allocation6], %s205
          %s207 = sand.u32 %s96, 1
          %s208 = smul.addr %s207, 8
          %s209 = scalar_lea.vmem [#allocation7], %s208
          %s211 = ssub.s32 128, 128
          %212 = vsyncadd %s206, %s211
          %s213 = smul.addr %s26, 2
          %s214 = smul.addr %s25, 6
          %s215 = sadd.s32 %s213, %s214
          %s216 = smul.addr %s215, 64
          %s217 = scalar_lea.hbm %s2, %s216
          %s218 = sshll.u32 %s209, 4
          %s219 = int_to_ptr.vmem [resolvable:$true] %s218
          %224 = dma.hbm_to_vmem [thread:$0]  %s217, 128, %s219, %s206, 64, 64, 4
        $region28: #{tpu_custom_call.1} parent=15 // pred_fallthru
          _
      $region16: #{tpu_custom_call.1} parent=5 // pred_fallthru
        _
      %p225 = scmp.le.s32.totalorder 1, %s18
      %p226 = scmp.lt.s32.totalorder %s18, 7
      %p227 = pnand %p225, %p226
      %p228 = pneg %p227
      // Predicated region
      $region29: #{tpu_custom_call.1} parent=5 // pred_check
        _
      $region30: #{tpu_custom_call.1} parent=5 // pred_check_branch
        %230 = sbr.rel (%p227) target = $region32
      $region31: #{tpu_custom_call.1} parent=5 // pred_region
        %s231 = ssub.s32 %s18, 1
        %s232 = sand.u32 %s43, 1
        %s233 = scalar_lea.sflag [#allocation3], %s232
        %s234 = sand.u32 %s43, 1
        %s235 = smul.addr %s234, 16
        %s236 = scalar_lea.vmem [#allocation2], %s235
        // Predicated region
        $region33: #{tpu_custom_call.1} parent=31 // pred_check
          %p237 = pneg %p56
        $region34: #{tpu_custom_call.1} parent=31 // pred_check_branch
          %239 = sbr.rel (%p237) target = $region36
        $region35: #{tpu_custom_call.1} parent=31 // pred_region
          %240 = dma.done %s233, 256
        $region36: #{tpu_custom_call.1} parent=31 // pred_fallthru
          _
        %s241 = sand.u32 %s23, 1
        %s242 = scalar_lea.sflag [#allocation6], %s241
        %s243 = sand.u32 %s71, 1
        %s244 = smul.addr %s243, 16
        %s245 = scalar_lea.vmem [#allocation5], %s244
        // Predicated region
        $region37: #{tpu_custom_call.1} parent=31 // pred_check
          %p246 = pneg %p84
        $region38: #{tpu_custom_call.1} parent=31 // pred_check_branch
          %248 = sbr.rel (%p246) target = $region40
        $region39: #{tpu_custom_call.1} parent=31 // pred_region
          %249 = dma.done %s242, 256
        $region40: #{tpu_custom_call.1} parent=31 // pred_fallthru
          _
        %s250 = sand.u32 %s23, 1
        %s251 = scalar_lea.sflag [#allocation6], %s250
        %s252 = sand.u32 %s99, 1
        %s253 = smul.addr %s252, 8
        %s254 = scalar_lea.vmem [#allocation7], %s253
        // Predicated region
        $region41: #{tpu_custom_call.1} parent=31 // pred_check
          %p255 = pneg %p112
        $region42: #{tpu_custom_call.1} parent=31 // pred_check_branch
          %257 = sbr.rel (%p255) target = $region44
        $region43: #{tpu_custom_call.1} parent=31 // pred_region
          %258 = dma.done %s251, 128
        $region44: #{tpu_custom_call.1} parent=31 // pred_fallthru
          _
        %s259 = sand.u32 %s43, 1
        %s260 = scalar_lea.sflag [#allocation3], %s259
        %s261 = sand.u32 %s43, 1
        %s262 = smul.addr %s261, 16
        %s263 = scalar_lea.vmem [#allocation2], %s262
        %p264 = pneg %p56
        %p265 = pneg %p53
        %s266 = sand.u32 %s23, 1
        %s267 = scalar_lea.sflag [#allocation6], %s266
        %s268 = sand.u32 %s71, 1
        %s269 = smul.addr %s268, 16
        %s270 = scalar_lea.vmem [#allocation5], %s269
        %p271 = pneg %p84
        %p272 = pneg %p81
        %s273 = sand.u32 %s23, 1
        %s274 = scalar_lea.sflag [#allocation6], %s273
        %s275 = sand.u32 %s99, 1
        %s276 = smul.addr %s275, 8
        %s277 = scalar_lea.vmem [#allocation7], %s276
        %p278 = pneg %p112
        %p279 = pneg %p109
        %p280 = pneg %p138
        %p281 = pneg %p135
        %s282 = sand.u32 %s125, 1
        %s283 = scalar_lea.sflag [#allocation4], %s282
        %s284 = sand.u32 %s125, 1
        %s285 = smul.addr %s284, 16
        %s286 = scalar_lea.vmem [#allocation8], %s285
        %s287 = smul.u32 2, %s28
        %p289 = scmp.eq.s32.totalorder %s28, 0
        // Predicated region
        $region45: #{tpu_custom_call.1} parent=31 // pred_check
          %p290 = pneg %p289
        $region46: #{tpu_custom_call.1} parent=31 // pred_check_branch
          %292 = sbr.rel (%p290) target = $region48
        $region47: #{tpu_custom_call.1} parent=31 // pred_region
          %v293 = vld [vmem:[%s236] sm:$0xff]
          %v294 = vld [vmem:[%s236 + $0x8] sm:$0xff]
          %295 = vst [vmem:[%s286] sm:$0xff] %v293
          %296 = vst [vmem:[%s286 + $0x8] sm:$0xff] %v294
        $region48: #{tpu_custom_call.1} parent=31 // pred_fallthru
          _
        %v297 = vld [vmem:[%s254] sm:$0xf]
        %v298 = vld [vmem:[%s254 + $0x4] sm:$0xf]
        %s299 = scalar_lea.vmem %s245, 8 [#allocation5]
        %v300 = vld [vmem:[%s299] sm:$0xf]
        %v301 = vld [vmem:[%s299 + $0x4] sm:$0xf]
        %v304 = vunpack.c.l.b16 %v297
        %v305 = vunpack.c.l.b16 %v298
        %v306 = vpack.c.b16 %v305, %v304
        %v309 = vunpack.c.l.b16 %v300
        %v310 = vunpack.c.l.b16 %v301
        %v311 = vpack.c.b16 %v310, %v309
        %vm313 = vcmask 130048
        %v315 = vsel %vm313, %v306, 0
        %317 = vmatprep.subr.bf16.mxu0 0
        %318 = vmatpush1.bf16.msra.mxu0 0
        %319 = vmatprep.subr.bf16.mxu0 0
        %320 = vmatpush1.bf16.msra.mxu0 0
        %321 = vmatprep.subr.bf16.mxu0 0
        %322 = vmatpush1.bf16.msra.mxu0 0
        %323 = vmatprep.subr.bf16.mxu0 0
        %324 = vmatpush1.bf16.msra.mxu0 0
        %325 = vmatprep.subr.bf16.mxu0 0
        %326 = vmatpush1.bf16.msra.mxu0 0
        %327 = vmatprep.subr.bf16.mxu0 0
        %328 = vmatpush1.bf16.msra.mxu0 0
        %329 = vmatprep.subr.bf16.mxu0 0
        %330 = vmatpush1.bf16.msra.mxu0 0
        %331 = vmatprep.subr.bf16.mxu0 0
        %332 = vmatpush1.bf16.msra.mxu0 %v311
        %333 = vmatprep.subr.bf16.mxu0 0
        %334 = vmatpush2.bf16.msra.mxu0 0
        %335 = vmatprep.subr.bf16.mxu0 0
        %336 = vmatpush2.bf16.msra.mxu0 0
        %337 = vmatprep.subr.bf16.mxu0 0
        %338 = vmatpush2.bf16.msra.mxu0 0
        %339 = vmatprep.subr.bf16.mxu0 0
        %340 = vmatpush2.bf16.msra.mxu0 0
        %341 = vmatprep.subr.bf16.mxu0 0
        %342 = vmatpush2.bf16.msra.mxu0 0
        %343 = vmatprep.subr.bf16.mxu0 0
        %344 = vmatpush2.bf16.msra.mxu0 0
        %345 = vmatprep.subr.bf16.mxu0 0
        %346 = vmatpush2.bf16.msra.mxu0 0
        %347 = vmatprep.subr.bf16.mxu0 0
        %348 = vmatpush2.bf16.msra.mxu0 0
        %349 = vmatprep.mubr.bf16.mxu0 0
        %350 = vmatmul.mubr.bf16.gmra.mxu0 %v315
        %v351 = vpop.f32.mrf.mxu0
        %v352 = vadd.f32 0.0, %v351
        %v353 = vpop.f32.mrf.mxu0
        %v354 = vpop.f32.mrf.mxu0
        %v355 = vadd.f32 0.0, %v354
        %v356 = vpop.f32.mrf.mxu0
        %357 = vdwg.mxu0
        %v358 = vld [vmem:[%s245] sm:$0xf]
        %v359 = vld [vmem:[%s245 + $0x4] sm:$0xf]
        %v360 = vunpack.c.l.bf16 %v358
        %v361 = vunpack.c.l.bf16 %v359
        %v362 = vadd.f32 %v360, %v352
        %v363 = vadd.f32 %v361, %v355
        %v364 = vpack.c.bf16 %v363, %v362
        %v365 = vld [vmem:[%s286] sm:$0xff]
        %v366 = vld [vmem:[%s286 + $0x8] sm:$0xff]
        %367 = vmatprep.subr.bf16.mxu0 0
        %368 = vmatpush1.bf16.msra.mxu0 0
        %369 = vmatprep.subr.bf16.mxu0 0
        %370 = vmatpush1.bf16.msra.mxu0 0
        %371 = vmatprep.subr.bf16.mxu0 0
        %372 = vmatpush1.bf16.msra.mxu0 0
        %373 = vmatprep.subr.bf16.mxu0 0
        %374 = vmatpush1.bf16.msra.mxu0 0
        %375 = vmatprep.subr.bf16.mxu0 0
        %376 = vmatpush1.bf16.msra.mxu0 0
        %377 = vmatprep.subr.bf16.mxu0 0
        %378 = vmatpush1.bf16.msra.mxu0 0
        %379 = vmatprep.subr.bf16.mxu0 0
        %380 = vmatpush1.bf16.msra.mxu0 0
        %381 = vmatprep.subr.bf16.mxu0 0
        %382 = vmatpush1.bf16.msra.mxu0 %v364
        %383 = vmatprep.subr.bf16.mxu0 0
        %384 = vmatpush2.bf16.msra.mxu0 0
        %385 = vmatprep.subr.bf16.mxu0 0
        %386 = vmatpush2.bf16.msra.mxu0 0
        %387 = vmatprep.subr.bf16.mxu0 0
        %388 = vmatpush2.bf16.msra.mxu0 0
        %389 = vmatprep.subr.bf16.mxu0 0
        %390 = vmatpush2.bf16.msra.mxu0 0
        %391 = vmatprep.subr.bf16.mxu0 0
        %392 = vmatpush2.bf16.msra.mxu0 0
        %393 = vmatprep.subr.bf16.mxu0 0
        %394 = vmatpush2.bf16.msra.mxu0 0
        %395 = vmatprep.subr.bf16.mxu0 0
        %396 = vmatpush2.bf16.msra.mxu0 0
        %397 = vmatprep.subr.bf16.mxu0 0
        %398 = vmatpush2.bf16.msra.mxu0 0
        %399 = vmatprep.mubr.bf16.mxu0 0
        %400 = vmatmul.mubr.bf16.gmra.mxu0 %v315
        %v401 = vpop.f32.mrf.mxu0
        %v402 = vadd.f32 0.0, %v401
        %v403 = vpop.f32.mrf.mxu0
        %v404 = vpop.f32.mrf.mxu0
        %v405 = vadd.f32 0.0, %v404
        %v406 = vpop.f32.mrf.mxu0
        %407 = vdwg.mxu0
        %v408 = vadd.f32 %v365, %v402
        %v409 = vadd.f32 %v366, %v405
        %410 = vst [vmem:[%s286] sm:$0xff] %v408
        %411 = vst [vmem:[%s286 + $0x8] sm:$0xff] %v409
        %s412 = sand.u32 %s125, 1
        %s413 = scalar_lea.sflag [#allocation4], %s412
        %s414 = sand.u32 %s125, 1
        %s415 = smul.addr %s414, 16
        %s416 = scalar_lea.vmem [#allocation8], %s415
        // Predicated region
        $region49: #{tpu_custom_call.1} parent=31 // pred_check
          %p417 = pneg %p135
        $region50: #{tpu_custom_call.1} parent=31 // pred_check_branch
          %419 = sbr.rel (%p417) target = $region52
        $region51: #{tpu_custom_call.1} parent=31 // pred_region
          %s421 = ssub.s32 256, 256
          %422 = vsyncadd %s413, %s421
          %s423 = smul.addr %s27, 2
          %s424 = smul.addr %s423, 128
          %s425 = scalar_lea.hbm %s3, %s424
          %s426 = sshll.u32 %s416, 4
          %s427 = int_to_ptr.vmem [resolvable:$true] %s426
          %432 = dma.vmem_to_hbm [thread:$0]  %s427, 256, %s425, %s413, 128, 128, 8
        $region52: #{tpu_custom_call.1} parent=31 // pred_fallthru
          _
      $region32: #{tpu_custom_call.1} parent=5 // pred_fallthru
        _
      %p433 = scmp.le.s32.totalorder 2, %s18
      // Predicated region
      $region53: #{tpu_custom_call.1} parent=5 // pred_check
        %p434 = pneg %p433
      $region54: #{tpu_custom_call.1} parent=5 // pred_check_branch
        %436 = sbr.rel (%p434) target = $region56
      $region55: #{tpu_custom_call.1} parent=5 // pred_region
        %s437 = ssub.s32 %s18, 2
        // Predicated region
        $region57: #{tpu_custom_call.1} parent=55 // pred_check
          %p438 = pneg %p141
        $region58: #{tpu_custom_call.1} parent=55 // pred_check_branch
          %440 = sbr.rel (%p438) target = $region60
        $region59: #{tpu_custom_call.1} parent=55 // pred_region
          %s441 = sand.u32 %s126, 1
          %s442 = scalar_lea.sflag [#allocation4], %s441
          %s443 = sand.u32 %s126, 1
          %s444 = smul.addr %s443, 16
          %s445 = scalar_lea.vmem [#allocation8], %s444
          %446 = dma.done %s442, 256
        $region60: #{tpu_custom_call.1} parent=55 // pred_fallthru
          _
      $region56: #{tpu_custom_call.1} parent=5 // pred_fallthru
        _
    $region6: #{tpu_custom_call.1} parent=1 // loop_footer
      %s22 = sadd.s32 1, %s18
    $region7: #{tpu_custom_call.1} parent=1 // loop_footer_branch
      %17 = sbr.rel target = $region3
    $region8: #{tpu_custom_call.1} parent=1 // loop_exit
      _
    %447 = vsyncpa [#allocation3], 1
    %s448 = scalar_lea.sflag [#allocation3], 1
    %449 = vsyncpa %s448, 1
    %450 = vsyncpa [#allocation6], 1
    %s451 = scalar_lea.sflag [#allocation6], 1
    %452 = vsyncpa %s451, 1
    %453 = vsyncpa [#allocation4], 1
    %s454 = scalar_lea.sflag [#allocation4], 1
    %455 = vsyncpa %s454, 1

</llo_original>
